<compile_context>
chip_gen: v7x
topology: tpu7x:2x2x1
jax: 0.10.0
libtpu: 0.0.40
codegen_flags: <defaults>
</compile_context>

<pallas_src>
import functools

import jax
import jax.numpy as jnp
from jax.experimental import pallas as pl
from jax.experimental.pallas import tpu as pltpu

_LANE = 128
_SUB = 8
_MAX_BLK_ROWS = 8192                 # 4 MiB per f32 input block; sweepable.
_VMEM_LIMIT_BYTES = 48 * 1024 * 1024  # inputs double-buffered + temps + slack.


def _round_up(x, m):
    return ((x + m - 1) // m) * m


def _sublane_pack(dtype):
    """Sublane packing of the second-to-last dim for this dtype."""
    itemsize = jnp.dtype(dtype).itemsize
    return _SUB * max(1, 4 // itemsize)   # f32 -> 8, bf16 -> 16, int8 -> 32


def _prep_flat(x):
    """Flatten; keep a narrow streaming dtype (bool->int8, f64->f32)."""
    if x.dtype == jnp.bool_:
        x = x.astype(jnp.int8)
    elif jnp.dtype(x.dtype).itemsize > 4:
        x = x.astype(jnp.float32)
    return x.reshape(-1)


def _dice_partial_kernel(p_ref, a_ref, out_ref, acc_i_ref, acc_u_ref, *,
                         blk_rows, total_rows, needs_mask):
    i = pl.program_id(0)
    last = pl.num_programs(0) - 1

    @pl.when(i == 0)
    def _init():
        acc_i_ref[...] = jnp.zeros_like(acc_i_ref)
        acc_u_ref[...] = jnp.zeros_like(acc_u_ref)

    # Stream in native dtype; compute/accumulate in f32.
    p = p_ref[...].astype(jnp.float32)
    a = a_ref[...].astype(jnp.float32)

    def _accumulate(pv, av):
        # Reduce the (blk_rows, 128) block to one vreg (8, 128) along the
        # sublane-tiled major axis: pure VALU vreg adds, no XLU.  The final
        # cross-lane/sublane reduce happens once, in the finalize step.
        ip = (av * pv).reshape(-1, _SUB, _LANE)
        su = (av + pv).reshape(-1, _SUB, _LANE)   # sum(a) + sum(p) == sum(a+p)
        acc_i_ref[...] += jnp.sum(ip, axis=0)
        acc_u_ref[...] += jnp.sum(su, axis=0)

    if needs_mask:
        # Only the last block can be ragged; keep the steady state clean.
        @pl.when(i != last)
        def _clean():
            _accumulate(p, a)

        @pl.when(i == last)
        def _masked():
            row0 = i * blk_rows
            row_idx = jax.lax.broadcasted_iota(jnp.int32, p.shape, 0) + row0
            valid = row_idx < total_rows
            zero = jnp.float32(0.0)
            _accumulate(jnp.where(valid, p, zero), jnp.where(valid, a, zero))
    else:
        _accumulate(p, a)

    @pl.when(i == last)
    def _finalize():
        out_ref[0, 0] = jnp.sum(acc_i_ref[...])
        out_ref[0, 1] = jnp.sum(acc_u_ref[...])


def dice_loss(y_pred, y_act, smooth=1e-05, max_blk_rows=_MAX_BLK_ROWS):
    """Pallas TPU implementation of Dice.forward(y_pred, y_act)."""
    assert y_pred.shape == y_act.shape

    pf = _prep_flat(y_pred)
    af = _prep_flat(y_act)
    n = int(pf.size)

    rows = n // _LANE
    rem = n - rows * _LANE

    intersect = jnp.float32(0.0)
    union = jnp.float32(0.0)

    if rows > 0:
        n_main = rows * _LANE
        # Free reshape (no pad / no copy) in the common case rem == 0.
        p2d = (pf if rem == 0 else pf[:n_main]).reshape(rows, _LANE)
        a2d = (af if rem == 0 else af[:n_main]).reshape(rows, _LANE)

        # Round the block to the coarser of the two dtypes' sublane packing.
        pack = max(_sublane_pack(p2d.dtype), _sublane_pack(a2d.dtype))
        blk_rows = min(int(max_blk_rows), _round_up(rows, pack))
        blk_rows = _round_up(blk_rows, pack)
        num_blocks = pl.cdiv(rows, blk_rows)
        needs_mask = (rows % blk_rows) != 0

        kernel = functools.partial(
            _dice_partial_kernel,
            blk_rows=blk_rows,
            total_rows=rows,
            needs_mask=needs_mask,
        )

        partials = pl.pallas_call(
            kernel,
            out_shape=jax.ShapeDtypeStruct((1, 2), jnp.float32),
            grid_spec=pltpu.PrefetchScalarGridSpec(
                num_scalar_prefetch=0,
                grid=(num_blocks,),
                in_specs=[
                    pl.BlockSpec((blk_rows, _LANE), lambda i: (i, 0)),
                    pl.BlockSpec((blk_rows, _LANE), lambda i: (i, 0)),
                ],
                out_specs=pl.BlockSpec((1, 2), lambda i: (0, 0),
                                       memory_space=pltpu.MemorySpace.SMEM),
                scratch_shapes=[
                    pltpu.VMEM((_SUB, _LANE), jnp.float32),
                    pltpu.VMEM((_SUB, _LANE), jnp.float32),
                ],
            ),
            compiler_params=pltpu.CompilerParams(
                dimension_semantics=("arbitrary",),
                vmem_limit_bytes=_VMEM_LIMIT_BYTES),
        )(p2d, a2d)

        intersect = intersect + partials[0, 0]
        union = union + partials[0, 1]

    if rem:
        # Sub-128 flat tail (rare awkward sizes): negligible work, done in JAX.
        pt = pf[n - rem:].astype(jnp.float32)
        at = af[n - rem:].astype(jnp.float32)
        intersect = intersect + jnp.sum(at * pt)
        union = union + jnp.sum(at) + jnp.sum(pt)

    smooth = jnp.float32(smooth)
    return 1.0 - (2.0 * intersect + smooth) / (union + smooth)


def dice_loss_ref(y_pred, y_act, smooth=1e-05):
    p = y_pred.astype(jnp.float32)
    a = y_act.astype(jnp.float32)
    intersect = jnp.sum(a * p)
    union = jnp.sum(a) + jnp.sum(p)
    return 1.0 - (2.0 * intersect + smooth) / (union + smooth)


# TODO(synk): Dice.backward (manual analytic gradient) is not implemented; only
# the forward pass is translated.

if __name__ == "__main__":
    key = jax.random.PRNGKey(0)
    k1, k2, k3, k4 = jax.random.split(key, 4)

    # Shapes consistent with a UNet segmentation output: NCHW.
    shape = (2, 4, 16, 16)
    y_pred = jax.nn.sigmoid(jax.random.normal(k1, shape, dtype=jnp.float32))
    y_act = (jax.random.uniform(k2, shape) > 0.5).astype(jnp.float32)

    loss = jax.block_until_ready(dice_loss(y_pred, y_act))
    ref = dice_loss_ref(y_pred, y_act)
    assert jnp.allclose(loss, ref, atol=1e-5, rtol=1e-5), (loss, ref)

    # Exercise the multi-block reduction path with a small block override.
    loss2 = jax.block_until_ready(dice_loss(y_pred, y_act, max_blk_rows=8))
    assert jnp.allclose(loss2, ref, atol=1e-5, rtol=1e-5), (loss2, ref)

    # Ragged size: rows not a multiple of 8 and flat size not a multiple of 128
    # (exercises the gated in-kernel row mask and the wrapper tail path).
    shape3 = (2, 3, 10, 16)
    y_pred3 = jax.nn.sigmoid(jax.random.normal(k3, shape3, dtype=jnp.float32))
    y_act3 = (jax.random.uniform(k4, shape3) > 0.5).astype(jnp.float32)
    loss3 = jax.block_until_ready(dice_loss(y_pred3, y_act3))
    ref3 = dice_loss_ref(y_pred3, y_act3)
    assert jnp.allclose(loss3, ref3, atol=1e-5, rtol=1e-5), (loss3, ref3)

    print("KERNEL_OK")
</pallas_src>

<mosaic_0001>
module attributes {stable_mosaic.version = 11 : i64} {
  func.func @_dice_partial_kernel(%arg0: i32, %arg1: memref<16x128xf32, #tpu.memory_space<vmem>>, %arg2: memref<16x128xf32, #tpu.memory_space<vmem>>, %arg3: memref<1x2xf32, #tpu.memory_space<smem>>, %arg4: memref<8x128xf32, #tpu.memory_space<vmem>>, %arg5: memref<8x128xf32, #tpu.memory_space<vmem>>) attributes {dimension_semantics = [#tpu.dimension_semantics<arbitrary>], iteration_bounds = array<i64: 1>, scalar_prefetch = 0 : i64, scratch_operands = 2 : i64, tpu.core_type = #tpu.core_type<tc>, window_params = [{transform_indices = @transform_0, window_bounds = array<i64: 16, 128>}, {transform_indices = @transform_1, window_bounds = array<i64: 16, 128>}, {transform_indices = @transform_2, window_bounds = array<i64: 1, 2>}]} {
    %c0_i32 = arith.constant 0 : i32
    %0 = arith.cmpi eq, %arg0, %c0_i32 : i32
    %1 = arith.extui %0 : i1 to i32
    %c0_i32_0 = arith.constant 0 : i32
    %2 = arith.cmpi ne, %1, %c0_i32_0 : i32
    scf.if %2 {
      %cst_15 = arith.constant 0.000000e+00 : f32
      %20 = vector.broadcast %cst_15 : f32 to vector<8x128xf32>
      %c0_16 = arith.constant 0 : index
      %c0_17 = arith.constant 0 : index
      %21 = vector.load %arg4[%c0_16, %c0_17] : memref<8x128xf32, #tpu.memory_space<vmem>>, vector<8x128xf32>
      tpu.vector_store %arg4[%c0_16, %c0_17], %20 {strides = array<i32>} : memref<8x128xf32, #tpu.memory_space<vmem>>, vector<8x128xf32>,
      %cst_18 = arith.constant 0.000000e+00 : f32
      %22 = vector.broadcast %cst_18 : f32 to vector<8x128xf32>
      %c0_19 = arith.constant 0 : index
      %c0_20 = arith.constant 0 : index
      %23 = vector.load %arg5[%c0_19, %c0_20] : memref<8x128xf32, #tpu.memory_space<vmem>>, vector<8x128xf32>
      tpu.vector_store %arg5[%c0_19, %c0_20], %22 {strides = array<i32>} : memref<8x128xf32, #tpu.memory_space<vmem>>, vector<8x128xf32>,
    } else {
    }
    %c0 = arith.constant 0 : index
    %c0_1 = arith.constant 0 : index
    %3 = vector.load %arg1[%c0, %c0_1] : memref<16x128xf32, #tpu.memory_space<vmem>>, vector<16x128xf32>
    %c0_2 = arith.constant 0 : index
    %c0_3 = arith.constant 0 : index
    %4 = vector.load %arg2[%c0_2, %c0_3] : memref<16x128xf32, #tpu.memory_space<vmem>>, vector<16x128xf32>
    %5 = arith.mulf %4, %3 : vector<16x128xf32>
    %6 = vector.shape_cast %5 : vector<16x128xf32> to vector<2x8x128xf32>
    %7 = arith.addf %4, %3 : vector<16x128xf32>
    %8 = vector.shape_cast %7 : vector<16x128xf32> to vector<2x8x128xf32>
    %c0_4 = arith.constant 0 : index
    %c0_5 = arith.constant 0 : index
    %9 = vector.load %arg4[%c0_4, %c0_5] : memref<8x128xf32, #tpu.memory_space<vmem>>, vector<8x128xf32>
    %cst = arith.constant dense<0.000000e+00> : vector<8x128xf32>
    %10 = vector.multi_reduction <add>, %6, %cst [0] : vector<2x8x128xf32> to vector<8x128xf32>
    %11 = arith.addf %9, %10 : vector<8x128xf32>
    %c0_6 = arith.constant 0 : index
    %c0_7 = arith.constant 0 : index
    %12 = vector.load %arg4[%c0_6, %c0_7] : memref<8x128xf32, #tpu.memory_space<vmem>>, vector<8x128xf32>
    tpu.vector_store %arg4[%c0_6, %c0_7], %11 {strides = array<i32>} : memref<8x128xf32, #tpu.memory_space<vmem>>, vector<8x128xf32>,
    %c0_8 = arith.constant 0 : index
    %c0_9 = arith.constant 0 : index
    %13 = vector.load %arg5[%c0_8, %c0_9] : memref<8x128xf32, #tpu.memory_space<vmem>>, vector<8x128xf32>
    %cst_10 = arith.constant dense<0.000000e+00> : vector<8x128xf32>
    %14 = vector.multi_reduction <add>, %8, %cst_10 [0] : vector<2x8x128xf32> to vector<8x128xf32>
    %15 = arith.addf %13, %14 : vector<8x128xf32>
    %c0_11 = arith.constant 0 : index
    %c0_12 = arith.constant 0 : index
    %16 = vector.load %arg5[%c0_11, %c0_12] : memref<8x128xf32, #tpu.memory_space<vmem>>, vector<8x128xf32>
    tpu.vector_store %arg5[%c0_11, %c0_12], %15 {strides = array<i32>} : memref<8x128xf32, #tpu.memory_space<vmem>>, vector<8x128xf32>,
    %c0_i32_13 = arith.constant 0 : i32
    %17 = arith.cmpi eq, %arg0, %c0_i32_13 : i32
    %18 = arith.extui %17 : i1 to i32
    %c0_i32_14 = arith.constant 0 : i32
    %19 = arith.cmpi ne, %18, %c0_i32_14 : i32
    scf.if %19 {
      %c0_15 = arith.constant 0 : index
      %c0_16 = arith.constant 0 : index
      %20 = vector.load %arg4[%c0_15, %c0_16] : memref<8x128xf32, #tpu.memory_space<vmem>>, vector<8x128xf32>
      %21 = vector.shape_cast %20 : vector<8x128xf32> to vector<1x8x128xf32>
      %cst_17 = arith.constant dense<0.000000e+00> : vector<1xf32>
      %22 = vector.multi_reduction <add>, %21, %cst_17 [1, 2] : vector<1x8x128xf32> to vector<1xf32>
      %23 = vector.shape_cast %22 : vector<1xf32> to vector<1x1x1xf32>
      %24 = vector.extract %23[0, 0, 0] : f32 from vector<1x1x1xf32>
      %c0_18 = arith.constant 0 : index
      %c0_19 = arith.constant 0 : index
      %25 = memref.load %arg3[%c0_18, %c0_19] : memref<1x2xf32, #tpu.memory_space<smem>>
      memref.store %24, %arg3[%c0_18, %c0_19] : memref<1x2xf32, #tpu.memory_space<smem>>
      %c0_20 = arith.constant 0 : index
      %c0_21 = arith.constant 0 : index
      %26 = vector.load %arg5[%c0_20, %c0_21] : memref<8x128xf32, #tpu.memory_space<vmem>>, vector<8x128xf32>
      %27 = vector.shape_cast %26 : vector<8x128xf32> to vector<1x8x128xf32>
      %cst_22 = arith.constant dense<0.000000e+00> : vector<1xf32>
      %28 = vector.multi_reduction <add>, %27, %cst_22 [1, 2] : vector<1x8x128xf32> to vector<1xf32>
      %29 = vector.shape_cast %28 : vector<1xf32> to vector<1x1x1xf32>
      %30 = vector.extract %29[0, 0, 0] : f32 from vector<1x1x1xf32>
      %c0_23 = arith.constant 0 : index
      %c1 = arith.constant 1 : index
      %31 = memref.load %arg3[%c0_23, %c1] : memref<1x2xf32, #tpu.memory_space<smem>>
      memref.store %30, %arg3[%c0_23, %c1] : memref<1x2xf32, #tpu.memory_space<smem>>
    } else {
    }
    return
  }
  func.func @transform_0(%arg0: i32) -> (i32, i32) {
    %c0_i32 = arith.constant 0 : i32
    %c0_i32_0 = arith.constant 0 : i32
    return %arg0, %c0_i32 : i32, i32
  }
  func.func @transform_1(%arg0: i32) -> (i32, i32) {
    %c0_i32 = arith.constant 0 : i32
    %c0_i32_0 = arith.constant 0 : i32
    return %arg0, %c0_i32 : i32, i32
  }
  func.func @transform_2(%arg0: i32) -> (i32, i32) {
    %c0_i32 = arith.constant 0 : i32
    %c0_i32_0 = arith.constant 0 : i32
    %c0_i32_1 = arith.constant 0 : i32
    return %c0_i32, %c0_i32_0 : i32, i32
  }
}

</mosaic_0001>

<llo_original>
// kernel: tpu_custom_call.1
$region0: #{tpu_custom_call.1}
  #allocation0 [shape = 'u32[]', space=smem, size = 0x4, offset = 0x4, fixed_abs, tag = 'smem constant byte address 0x4 - core index']
  #allocation1 [shape = 'u32[144,128]{1,0:T(1,128)}', space=vmem, size = 0x12000, scoped, tag = 'internal scratch']
  #allocation2 [shape = 'f32[8,128]{1,0:T(8,128)}', space=vmem, size = 0x1000, scoped, tag = 'scratch operand']
  #allocation3 [shape = 'f32[8,128]{1,0:T(8,128)}', space=vmem, size = 0x1000, scoped, tag = 'scratch operand']
  %s0 = inlined_call_operand.hbm [shape: f32[16,128], index: 0, kind: input, shape index: {}]
  %s1 = inlined_call_operand.hbm [shape: f32[16,128], index: 1, kind: input, shape index: {}]
  %s2 = inlined_call_operand.hbm [shape: f32[1,2], index: 2, kind: output, shape index: {}]
  %s3 = sld [smem:[#allocation0]]
  $region34: #{tpu_custom_call.1} parent=0
    _
  %s5 = ssub.s32 1, %s3
  %s6 = scalar_select 0, %s5, %s3
  $region1: #{tpu_custom_call.1} parent=0
    #allocation4 [shape = 'u8[8192]{0}', space=vmem, size = 0x2000, scoped, tag = 'input window, operand 0, single buffered']
    #allocation5 [shape = 's32[1]{0}', space=sflag, size = 0x4, scoped, tag = 'scoped memory for tpu_custom_call.1']
    #allocation6 [shape = 's32[1]{0}', space=sflag, size = 0x4, scoped, tag = 'scoped memory for tpu_custom_call.1']
    #allocation7 [shape = 'u8[8192]{0}', space=vmem, size = 0x2000, scoped, tag = 'input window, operand 1, single buffered']
    #allocation8 [shape = 's32[1]{0}', space=sflag, size = 0x4, scoped, tag = 'scoped memory for tpu_custom_call.1']
    #allocation9 [shape = 'u8[512]{0}', space=smem, size = 0x200, scoped, tag = 'output window, operand 0, single buffered']
    %7 = vsyncpa [#allocation5], 0
    %8 = vsyncpa [#allocation8], 0
    %9 = vsyncpa [#allocation6], 0
    // Predicated region
    $region2: #{tpu_custom_call.1} parent=1 // pred_check
      _
    $region3: #{tpu_custom_call.1} parent=1 // pred_check_branch
      %11 = sbr.rel (0) target = $region5
    $region4: #{tpu_custom_call.1} parent=1 // pred_region
      %s13 = ssub.s32 256, 256
      %14 = vsyncadd [#allocation5], %s13
      %s15 = sshll.u32 [#allocation4], 4
      %s16 = int_to_ptr.vmem [resolvable:$true] %s15
      %21 = dma.hbm_to_vmem [thread:$0]  %s0, 256, %s16, [#allocation5], 128, 128, 8
    $region5: #{tpu_custom_call.1} parent=1 // pred_fallthru
      _
    // Predicated region
    $region6: #{tpu_custom_call.1} parent=1 // pred_check
      _
    $region7: #{tpu_custom_call.1} parent=1 // pred_check_branch
      %23 = sbr.rel (0) target = $region9
    $region8: #{tpu_custom_call.1} parent=1 // pred_region
      %s25 = ssub.s32 256, 256
      %26 = vsyncadd [#allocation8], %s25
      %s27 = sshll.u32 [#allocation7], 4
      %s28 = int_to_ptr.vmem [resolvable:$true] %s27
      %33 = dma.hbm_to_vmem [thread:$0]  %s1, 256, %s28, [#allocation8], 128, 128, 8
    $region9: #{tpu_custom_call.1} parent=1 // pred_fallthru
      _
    // Predicated region
    $region10: #{tpu_custom_call.1} parent=1 // pred_check
      _
    $region11: #{tpu_custom_call.1} parent=1 // pred_check_branch
      %35 = sbr.rel (0) target = $region13
    $region12: #{tpu_custom_call.1} parent=1 // pred_region
      %36 = dma.done [#allocation5], 256
    $region13: #{tpu_custom_call.1} parent=1 // pred_fallthru
      _
    // Predicated region
    $region14: #{tpu_custom_call.1} parent=1 // pred_check
      _
    $region15: #{tpu_custom_call.1} parent=1 // pred_check_branch
      %38 = sbr.rel (0) target = $region17
    $region16: #{tpu_custom_call.1} parent=1 // pred_region
      %39 = dma.done [#allocation8], 256
    $region17: #{tpu_custom_call.1} parent=1 // pred_fallthru
      _
    %p40 = scmp.eq.s32.totalorder 0, 0
    // Predicated region
    $region18: #{tpu_custom_call.1} parent=1 // pred_check
      %p41 = pneg %p40
    $region19: #{tpu_custom_call.1} parent=1 // pred_check_branch
      %43 = sbr.rel (%p41) target = $region21
    $region20: #{tpu_custom_call.1} parent=1 // pred_region
      %44 = vst [vmem:[#allocation2] sm:$0xff] 0.0
      %45 = vst [vmem:[#allocation3] sm:$0xff] 0.0
    $region21: #{tpu_custom_call.1} parent=1 // pred_fallthru
      _
    %v46 = vld [vmem:[#allocation4] sm:$0xff]
    %v47 = vld [vmem:[#allocation4 + $0x8] sm:$0xff]
    %v48 = vld [vmem:[#allocation7] sm:$0xff]
    %v49 = vld [vmem:[#allocation7 + $0x8] sm:$0xff]
    %v50 = vmul.f32 %v48, %v46
    %v51 = vmul.f32 %v49, %v47
    %v52 = vadd.f32 %v48, %v46
    %v53 = vadd.f32 %v49, %v47
    %v54 = vld [vmem:[#allocation2] sm:$0xff]
    %v55 = vadd.f32 %v50, %v51
    %v56 = vadd.f32 %v54, %v55
    %57 = vst [vmem:[#allocation2] sm:$0xff] %v56
    %v58 = vld [vmem:[#allocation3] sm:$0xff]
    %v59 = vadd.f32 %v52, %v53
    %v60 = vadd.f32 %v58, %v59
    %61 = vst [vmem:[#allocation3] sm:$0xff] %v60
    // Predicated region
    $region22: #{tpu_custom_call.1} parent=1 // pred_check
      %p62 = pneg %p40
    $region23: #{tpu_custom_call.1} parent=1 // pred_check_branch
      %64 = sbr.rel (%p62) target = $region25
    $region24: #{tpu_custom_call.1} parent=1 // pred_region
      %v65 = vld [vmem:[#allocation2] sm:$0xff]
      %66 = vadd.xlane.f32.xlu0 %v65
      %v67 = vpop.xlane.xlu0 %66
      %v68 = vrot.slane %v67, 4
      %v69 = vadd.f32 %v67, %v68
      %v70 = vrot.slane %v69, 2
      %v71 = vadd.f32 %v69, %v70
      %v72 = vrot.slane %v71, 1
      %v73 = vadd.f32 %v71, %v72
      %s74 = vtos %v73
      %s75 = scalar_lea.smem [#allocation9], 0
      %76 = sst [smem:[%s75]] %s74
      %v77 = vld [vmem:[#allocation3] sm:$0xff]
      %78 = vadd.xlane.f32.xlu0 %v77
      %v79 = vpop.xlane.xlu0 %78
      %v80 = vrot.slane %v79, 4
      %v81 = vadd.f32 %v79, %v80
      %v82 = vrot.slane %v81, 2
      %v83 = vadd.f32 %v81, %v82
      %v84 = vrot.slane %v83, 1
      %v85 = vadd.f32 %v83, %v84
      %s86 = vtos %v85
      %s87 = scalar_lea.smem [#allocation9], 1
      %88 = sst [smem:[%s87]] %s86
    $region25: #{tpu_custom_call.1} parent=1 // pred_fallthru
      _
    // Predicated region
    $region26: #{tpu_custom_call.1} parent=1 // pred_check
      _
    $region27: #{tpu_custom_call.1} parent=1 // pred_check_branch
      %90 = sbr.rel (0) target = $region29
    $region28: #{tpu_custom_call.1} parent=1 // pred_region
      %s92 = ssub.s32 16, 16
      %93 = vsyncadd [#allocation6], %s92
      %96 = dma.smem_to_hbm [#allocation9], 16, %s2, [#allocation6]
    $region29: #{tpu_custom_call.1} parent=1 // pred_fallthru
      _
    // Predicated region
    $region30: #{tpu_custom_call.1} parent=1 // pred_check
      _
    $region31: #{tpu_custom_call.1} parent=1 // pred_check_branch
      %98 = sbr.rel (0) target = $region33
    $region32: #{tpu_custom_call.1} parent=1 // pred_region
      %99 = dma.done [#allocation6], 16
    $region33: #{tpu_custom_call.1} parent=1 // pred_fallthru
      _
    %100 = sfence
    %101 = vsyncpa [#allocation5], 1
    %102 = vsyncpa [#allocation8], 1
    %103 = vsyncpa [#allocation6], 1

</llo_original>
